<compile_context>
chip_gen: v7x
topology: tpu7x:2x2x1
jax: 0.10.0
libtpu: 0.0.40
codegen_flags: <defaults>
</compile_context>

<pallas_src>
import functools

import jax
import jax.numpy as jnp
from jax.experimental import pallas as pl
from jax.experimental.pallas import tpu as pltpu


# ----------------------------- kernels ------------------------------------- #
def linear_kernel(x_ref, w_ref, b_ref, o_ref):
    # MXU matmul with f32 accumulation; bias add on the VPU in f32.
    acc = jnp.dot(x_ref[...], w_ref[...], preferred_element_type=jnp.float32)
    o_ref[...] = (acc + b_ref[...]).astype(o_ref.dtype)


def linear_kernel_ktiled(x_ref, w_ref, b_ref, o_ref, acc_ref):
    # K-reduction variant: grid = (batch_tiles, k_tiles), f32 accumulator scratch.
    k = pl.program_id(1)

    @pl.when(k == 0)
    def _():
        acc_ref[...] = jnp.zeros_like(acc_ref)

    acc_ref[...] += jnp.dot(x_ref[...], w_ref[...],
                            preferred_element_type=jnp.float32)

    @pl.when(k == pl.num_programs(1) - 1)
    def _():
        o_ref[...] = (acc_ref[...] + b_ref[...]).astype(o_ref.dtype)


# ----------------------------- helpers ------------------------------------- #
def _round_up(x, m):
    return (x + m - 1) // m * m


def _cdiv(a, b):
    return (a + b - 1) // b


def _vmem_budget():
    """Generation-aware VMEM budget (bytes) and physical capacity."""
    try:
        cap = int(pltpu.get_tpu_info().vmem_capacity_bytes)
    except Exception:
        cap = 64 * 1024 * 1024  # conservative fallback (v7x per-TC size)
    budget = min(int(0.70 * cap), 96 * 1024 * 1024)   # ~45 MiB on v7x, ~90 MiB on v5e/v6e
    return budget, cap


def _footprint(tb, k_blk, n, x_isz, w_isz, o_isz):
    """Double-buffered VMEM footprint for one pipeline configuration."""
    return (2 * tb * k_blk * x_isz      # x tiles (double buffered)
            + 2 * tb * n * o_isz        # out tiles (double buffered)
            + 2 * k_blk * n * w_isz     # weight block (buffer pair / resident)
            + 2 * n * 4                 # bias
            + tb * n * 4)               # f32 accumulator scratch (K-tiled path)


def _pick_batch_tile(B, k_blk, n, x_isz, w_isz, o_isz, budget):
    """Grow the batch tile toward the VMEM budget; keep enough grid steps."""
    tb = 256
    while tb < 8192 and _footprint(2 * tb, k_blk, n, x_isz, w_isz, o_isz) <= budget:
        tb *= 2
    while tb > 8 and _footprint(tb, k_blk, n, x_isz, w_isz, o_isz) > budget:
        tb //= 2
    # Keep >= ~8 grid steps for 2-TC sharding / pipelining on v7x (but never shrink
    # below 512 for that reason alone), and never exceed the (rounded) batch.
    tb = min(tb, max(512, _round_up(_cdiv(B, 8), 8)))
    tb = min(tb, _round_up(B, 8))
    return max(tb, 8)


def prepare_params(weight, bias, compute_dtype=jnp.float32):
    """One-time parameter layout prep (outside the forward hot path).

    weight: [num_classes, input_size] (PyTorch nn.Linear layout); bias: [num_classes].
    Returns (w_t [K, N] in compute_dtype, b_row [1, N] in f32).
    """
    w_t = jnp.asarray(weight, compute_dtype).T           # transpose once, not per call
    b_row = jnp.asarray(bias, jnp.float32).reshape(1, -1)
    return w_t, b_row


# ----------------------------- forward ------------------------------------- #
@functools.partial(jax.jit, static_argnames=("k_block",))
def logistic_regression_forward(x, w_t, b_row, k_block=None):
    """x: [B, input_size]; w_t: [input_size, num_classes]; b_row: [1, num_classes]."""
    B, K = x.shape
    K2, N = w_t.shape
    assert K == K2 and b_row.shape == (1, N)

    compute_dtype = w_t.dtype
    # For bf16 streaming on v6e/v7x, produce x in bf16 upstream; this cast is only
    # a fallback and costs an extra HBM pass if it fires.
    x_c = x if x.dtype == compute_dtype else x.astype(compute_dtype)
    out_dtype = x.dtype

    x_isz = jnp.dtype(compute_dtype).itemsize
    w_isz = jnp.dtype(compute_dtype).itemsize
    o_isz = jnp.dtype(out_dtype).itemsize

    budget, vmem_cap = _vmem_budget()

    # --- decide whether to tile the reduction (K) axis -----------------------
    kb = k_block
    if kb is None:
        # Auto: tile K only if a full-K layout cannot keep even a modest batch tile.
        if _footprint(256, K, N, x_isz, w_isz, o_isz) > budget:
            for cand in (2048, 1024, 512, 256, 128):
                if K % cand == 0:
                    kb = cand
                    break
    if kb is not None and (kb % 128 != 0 or K % kb != 0 or kb >= K):
        kb = None  # fall back to the full-K path

    k_for_tile = K if kb is None else kb
    tb = _pick_batch_tile(B, k_for_tile, N, x_isz, w_isz, o_isz, budget)

    need = _footprint(tb, k_for_tile, N, x_isz, w_isz, o_isz)
    vmem_limit = int(min(max(2 * need, 32 * 1024 * 1024), int(0.80 * vmem_cap)))

    cost = pl.CostEstimate(
        flops=2 * B * K * N,
        transcendentals=0,
        bytes_accessed=int(B * K * x_isz + K * N * w_isz + B * N * o_isz + N * 4),
    )

    if kb is None:
        # ------------------ single-axis (batch-streamed) path ----------------
        return pl.pallas_call(
            linear_kernel,
            out_shape=jax.ShapeDtypeStruct((B, N), out_dtype),
            grid=(pl.cdiv(B, tb),),                        # ragged tail handled by Pallas
            in_specs=[
                pl.BlockSpec((tb, K), lambda i: (i, 0)),   # streamed batch tiles
                pl.BlockSpec((K, N), lambda i: (0, 0)),    # weight: VMEM-resident
                pl.BlockSpec((1, N), lambda i: (0, 0)),    # bias:   VMEM-resident
            ],
            out_specs=pl.BlockSpec((tb, N), lambda i: (i, 0)),
            compiler_params=pltpu.CompilerParams(
                dimension_semantics=("parallel",),         # 2-TC sharding on v7x
                vmem_limit_bytes=vmem_limit,
            ),
            cost_estimate=cost,
        )(x_c, w_t, b_row)

    # ---------------------- K-tiled (reduction) path --------------------------
    return pl.pallas_call(
        linear_kernel_ktiled,
        out_shape=jax.ShapeDtypeStruct((B, N), out_dtype),
        grid=(pl.cdiv(B, tb), K // kb),                    # reduction axis last
        in_specs=[
            pl.BlockSpec((tb, kb), lambda i, k: (i, k)),
            pl.BlockSpec((kb, N), lambda i, k: (k, 0)),
            pl.BlockSpec((1, N), lambda i, k: (0, 0)),
        ],
        out_specs=pl.BlockSpec((tb, N), lambda i, k: (i, 0)),
        scratch_shapes=[pltpu.VMEM((tb, N), jnp.float32)],
        compiler_params=pltpu.CompilerParams(
            dimension_semantics=("parallel", "arbitrary"),
            vmem_limit_bytes=vmem_limit,
        ),
        cost_estimate=cost,
    )(x_c, w_t, b_row)


# ----------------------------- demo / check -------------------------------- #
if __name__ == "__main__":
    key = jax.random.PRNGKey(0)

    # ---- Test 1: small f32 case (matches the PyTorch module spec) ----------
    input_size, num_classes, batch = 32, 16, 8
    kx, kw, kb_ = jax.random.split(key, 3)
    x = jax.random.normal(kx, (batch, input_size), dtype=jnp.float32)
    weight = jax.random.normal(kw, (num_classes, input_size), dtype=jnp.float32) * 0.1
    bias = jax.random.normal(kb_, (num_classes,), dtype=jnp.float32) * 0.1

    w_t, b_row = prepare_params(weight, bias, compute_dtype=jnp.float32)
    out = jax.block_until_ready(logistic_regression_forward(x, w_t, b_row))
    ref = x @ weight.T + bias
    assert out.shape == (batch, num_classes)
    assert jnp.allclose(out, ref, atol=1e-5, rtol=1e-5)

    # ---- Test 2: exercise the K-tiled reduction path ------------------------
    K2_, N2_, B2_ = 512, 16, 64
    k1, k2, k3 = jax.random.split(jax.random.PRNGKey(1), 3)
    x2 = jax.random.normal(k1, (B2_, K2_), dtype=jnp.float32)
    w2 = jax.random.normal(k2, (N2_, K2_), dtype=jnp.float32) * 0.05
    b2 = jax.random.normal(k3, (N2_,), dtype=jnp.float32) * 0.1
    w2_t, b2_row = prepare_params(w2, b2, compute_dtype=jnp.float32)
    out2 = jax.block_until_ready(
        logistic_regression_forward(x2, w2_t, b2_row, k_block=128))
    ref2 = x2 @ w2.T + b2
    assert out2.shape == (B2_, N2_)
    assert jnp.allclose(out2, ref2, atol=1e-3, rtol=1e-3)

    # ---- Test 3: bf16 streaming (v6e/v7x recommendation), f32 accumulation --
    x_bf = x.astype(jnp.bfloat16)
    w_bf_t, b_bf_row = prepare_params(weight, bias, compute_dtype=jnp.bfloat16)
    out3 = jax.block_until_ready(
        logistic_regression_forward(x_bf, w_bf_t, b_bf_row))
    ref3 = (x_bf.astype(jnp.float32)
            @ weight.astype(jnp.bfloat16).astype(jnp.float32).T + bias)
    assert out3.shape == (batch, num_classes)
    assert jnp.allclose(out3.astype(jnp.float32), ref3, atol=3e-2, rtol=3e-2)

    print("KERNEL_OK")
</pallas_src>

<mosaic_0001>
module attributes {stable_mosaic.version = 11 : i64} {
  func.func @linear_kernel(%arg0: i32, %arg1: memref<8x32xf32, #tpu.memory_space<vmem>>, %arg2: memref<32x16xf32, #tpu.memory_space<vmem>>, %arg3: memref<1x16xf32, #tpu.memory_space<vmem>>, %arg4: memref<8x16xf32, #tpu.memory_space<vmem>>) attributes {dimension_semantics = [#tpu.dimension_semantics<parallel>], iteration_bounds = array<i64: 1>, scalar_prefetch = 0 : i64, scratch_operands = 0 : i64, tpu.core_type = #tpu.core_type<tc>, window_params = [{transform_indices = @transform_0, window_bounds = array<i64: 8, 32>}, {pipeline_mode = #tpu.pipeline_mode<synchronous>, transform_indices = @transform_1, window_bounds = array<i64: 32, 16>}, {pipeline_mode = #tpu.pipeline_mode<synchronous>, transform_indices = @transform_2, window_bounds = array<i64: 1, 16>}, {transform_indices = @transform_3, window_bounds = array<i64: 8, 16>}]} {
    %c0 = arith.constant 0 : index
    %c0_0 = arith.constant 0 : index
    %0 = vector.load %arg1[%c0, %c0_0] : memref<8x32xf32, #tpu.memory_space<vmem>>, vector<8x32xf32>
    %c0_1 = arith.constant 0 : index
    %c0_2 = arith.constant 0 : index
    %1 = vector.load %arg2[%c0_1, %c0_2] : memref<32x16xf32, #tpu.memory_space<vmem>>, vector<32x16xf32>
    %cst = arith.constant dense<0.000000e+00> : vector<8x16xf32>
    %2 = tpu.matmul %0, %1, %cst {dimension_numbers = #tpu.dot_dimension_numbers<[1], [0], [0], [1], [0, 0, 1, 1], [], []>} : vector<8x32xf32>, vector<32x16xf32>, vector<8x16xf32> -> vector<8x16xf32>
    %c0_3 = arith.constant 0 : index
    %c0_4 = arith.constant 0 : index
    %3 = vector.load %arg3[%c0_3, %c0_4] : memref<1x16xf32, #tpu.memory_space<vmem>>, vector<1x16xf32>
    %4 = vector.broadcast %3 : vector<1x16xf32> to vector<8x16xf32>
    %5 = arith.addf %2, %4 : vector<8x16xf32>
    %c0_5 = arith.constant 0 : index
    %c0_6 = arith.constant 0 : index
    %6 = vector.load %arg4[%c0_5, %c0_6] : memref<8x16xf32, #tpu.memory_space<vmem>>, vector<8x16xf32>
    tpu.vector_store %arg4[%c0_5, %c0_6], %5 {strides = array<i32>} : memref<8x16xf32, #tpu.memory_space<vmem>>, vector<8x16xf32>,
    return
  }
  func.func @transform_0(%arg0: i32) -> (i32, i32) {
    %c0_i32 = arith.constant 0 : i32
    %c0_i32_0 = arith.constant 0 : i32
    return %arg0, %c0_i32 : i32, i32
  }
  func.func @transform_1(%arg0: i32) -> (i32, i32) {
    %c0_i32 = arith.constant 0 : i32
    %c0_i32_0 = arith.constant 0 : i32
    %c0_i32_1 = arith.constant 0 : i32
    return %c0_i32, %c0_i32_0 : i32, i32
  }
  func.func @transform_2(%arg0: i32) -> (i32, i32) {
    %c0_i32 = arith.constant 0 : i32
    %c0_i32_0 = arith.constant 0 : i32
    %c0_i32_1 = arith.constant 0 : i32
    return %c0_i32, %c0_i32_0 : i32, i32
  }
  func.func @transform_3(%arg0: i32) -> (i32, i32) {
    %c0_i32 = arith.constant 0 : i32
    %c0_i32_0 = arith.constant 0 : i32
    return %arg0, %c0_i32 : i32, i32
  }
}

</mosaic_0001>

<llo_original>
// kernel: logistic_regression_forward.1
$region0: #{logistic_regression_forward.1}
  #allocation0 [shape = 'u32[]', space=smem, size = 0x4, offset = 0x4, fixed_abs, tag = 'smem constant byte address 0x4 - core index']
  #allocation1 [shape = 'u32[144,128]{1,0:T(1,128)}', space=vmem, size = 0x12000, scoped, tag = 'internal scratch']
  %s0 = inlined_call_operand.vmem [shape: f32[8,32], index: 0, kind: input, shape index: {}]
  %s1 = inlined_call_operand.vmem [shape: f32[32,16], index: 1, kind: input, shape index: {}]
  %s2 = inlined_call_operand.vmem [shape: f32[1,16], index: 2, kind: input, shape index: {}]
  %s3 = inlined_call_operand.hbm [shape: f32[8,16], index: 3, kind: output, shape index: {}]
  %s4 = sld [smem:[#allocation0]]
  $region22: #{logistic_regression_forward.1} parent=0
    _
  %s6 = ssub.s32 1, %s4
  %s7 = scalar_select 0, %s6, %s4
  $region1: #{logistic_regression_forward.1} parent=0
    #allocation2 [shape = 'u8[4096]{0}', space=vmem, size = 0x1000, scoped, tag = 'output window, operand 0, single buffered']
    #allocation3 [shape = 's32[1]{0}', space=sflag, size = 0x4, scoped, tag = 'scoped memory for logistic_regression_forward.1']
    %8 = vsyncpa [#allocation3], 0
    // Predicated region
    $region2: #{logistic_regression_forward.1} parent=1 // pred_check
      _
    $region3: #{logistic_regression_forward.1} parent=1 // pred_check_branch
      %10 = sbr.rel (0) target = $region5
    $region4: #{logistic_regression_forward.1} parent=1 // pred_region
      _
    $region5: #{logistic_regression_forward.1} parent=1 // pred_fallthru
      _
    // Predicated region
    $region6: #{logistic_regression_forward.1} parent=1 // pred_check
      _
    $region7: #{logistic_regression_forward.1} parent=1 // pred_check_branch
      %12 = sbr.rel (0) target = $region9
    $region8: #{logistic_regression_forward.1} parent=1 // pred_region
      _
    $region9: #{logistic_regression_forward.1} parent=1 // pred_fallthru
      _
    // Predicated region
    $region10: #{logistic_regression_forward.1} parent=1 // pred_check
      _
    $region11: #{logistic_regression_forward.1} parent=1 // pred_check_branch
      %14 = sbr.rel (0) target = $region13
    $region12: #{logistic_regression_forward.1} parent=1 // pred_region
      _
    $region13: #{logistic_regression_forward.1} parent=1 // pred_fallthru
      _
    %v15 = vld [vmem:[%s0] sm:$0xff]
    %v16 = vld [vmem:[%s1] sm:$0xff]
    %v17 = vld [vmem:[%s1 + $0x8] sm:$0xff]
    %v18 = vld [vmem:[%s1 + $0x10] sm:$0xff]
    %v19 = vld [vmem:[%s1 + $0x18] sm:$0xff]
    %v20 = vld [vmem:[%s2] sm:$0x1]
    %v22 = vlaneseq
    %v23 = vshrl.u32 %v22, 7
    %v24 = vsub.s32 0, %v23
    %v25 = vrot.slane %v20, %v24
    %vm27 = vcmask 261120
    %v29 = vsel %vm27, %v15, 0
    %31 = vmatprep.subr.mxu0 0.0
    %32 = vmatpush1.msra.mxu0 %v16
    %33 = vmatprep.subr.mxu0 0.0
    %34 = vmatpush1.msra.mxu0 %v17
    %35 = vmatprep.subr.mxu0 0.0
    %36 = vmatpush1.msra.mxu0 %v18
    %37 = vmatprep.subr.mxu0 0.0
    %38 = vmatpush1.msra.mxu0 %v19
    %39 = vmatprep.subr.mxu0 0.0
    %40 = vmatpush1.msra.mxu0 0.0
    %41 = vmatprep.subr.mxu0 0.0
    %42 = vmatpush1.msra.mxu0 0.0
    %43 = vmatprep.subr.mxu0 0.0
    %44 = vmatpush1.msra.mxu0 0.0
    %45 = vmatprep.subr.mxu0 0.0
    %46 = vmatpush1.msra.mxu0 0.0
    %47 = vmatprep.subr.mxu0 0.0
    %48 = vmatpush1.msra.mxu0 0.0
    %49 = vmatprep.subr.mxu0 0.0
    %50 = vmatpush1.msra.mxu0 0.0
    %51 = vmatprep.subr.mxu0 0.0
    %52 = vmatpush1.msra.mxu0 0.0
    %53 = vmatprep.subr.mxu0 0.0
    %54 = vmatpush1.msra.mxu0 0.0
    %55 = vmatprep.subr.mxu0 0.0
    %56 = vmatpush1.msra.mxu0 0.0
    %57 = vmatprep.subr.mxu0 0.0
    %58 = vmatpush1.msra.mxu0 0.0
    %59 = vmatprep.subr.mxu0 0.0
    %60 = vmatpush1.msra.mxu0 0.0
    %61 = vmatprep.subr.mxu0 0.0
    %62 = vmatpush1.msra.mxu0 0.0
    %63 = vmatprep.subr.mxu0 0.0
    %64 = vmatpush1.msra.mxu0 0.0
    %65 = vmatprep.subr.mxu0 0.0
    %66 = vmatpush1.msra.mxu0 0.0
    %67 = vmatprep.subr.mxu0 0.0
    %68 = vmatpush1.msra.mxu0 0.0
    %69 = vmatprep.subr.mxu0 0.0
    %70 = vmatpush1.msra.mxu0 0.0
    %71 = vmatprep.subr.mxu0 0.0
    %72 = vmatpush1.msra.mxu0 0.0
    %73 = vmatprep.subr.mxu0 0.0
    %74 = vmatpush1.msra.mxu0 0.0
    %75 = vmatprep.subr.mxu0 0.0
    %76 = vmatpush1.msra.mxu0 0.0
    %77 = vmatprep.subr.mxu0 0.0
    %78 = vmatpush1.msra.mxu0 0.0
    %79 = vmatprep.subr.mxu0 0.0
    %80 = vmatpush1.msra.mxu0 0.0
    %81 = vmatprep.subr.mxu0 0.0
    %82 = vmatpush1.msra.mxu0 0.0
    %83 = vmatprep.subr.mxu0 0.0
    %84 = vmatpush1.msra.mxu0 0.0
    %85 = vmatprep.subr.mxu0 0.0
    %86 = vmatpush1.msra.mxu0 0.0
    %87 = vmatprep.subr.mxu0 0.0
    %88 = vmatpush1.msra.mxu0 0.0
    %89 = vmatprep.subr.mxu0 0.0
    %90 = vmatpush1.msra.mxu0 0.0
    %91 = vmatprep.subr.mxu0 0.0
    %92 = vmatpush1.msra.mxu0 0.0
    %93 = vmatprep.subr.mxu0 0.0
    %94 = vmatpush1.msra.mxu0 0.0
    %95 = vmatprep.mubr.f32.mxu0 0.0
    %96 = vmatmul.mubr.f32.gmra.mrb[0].mxu0 %v29
    %v97 = vpop.f32.mrb[0].mxu0
    %v98 = vadd.f32 %v25, %v97
    %v99 = vpop.f32.mrb[0].mxu0
    %100 = vdwg.mxu0
    %vm101 = vcmask 130048
    %102 = vst.msk [vmem:[#allocation2] sm:$0xff] %vm101, %v98
    // Predicated region
    $region14: #{logistic_regression_forward.1} parent=1 // pred_check
      _
    $region15: #{logistic_regression_forward.1} parent=1 // pred_check_branch
      %104 = sbr.rel (0) target = $region17
    $region16: #{logistic_regression_forward.1} parent=1 // pred_region
      %s106 = ssub.s32 128, 128
      %107 = vsyncadd [#allocation3], %s106
      %s109 = sshll.u32 [#allocation2], 4
      %s110 = int_to_ptr.vmem [resolvable:$true] %s109
      %112 = dma.vmem_to_hbm [thread:$0]  %s110, 128, %s3, [#allocation3]
    $region17: #{logistic_regression_forward.1} parent=1 // pred_fallthru
      _
    // Predicated region
    $region18: #{logistic_regression_forward.1} parent=1 // pred_check
      _
    $region19: #{logistic_regression_forward.1} parent=1 // pred_check_branch
      %114 = sbr.rel (0) target = $region21
    $region20: #{logistic_regression_forward.1} parent=1 // pred_region
      %115 = dma.done [#allocation3], 128
    $region21: #{logistic_regression_forward.1} parent=1 // pred_fallthru
      _
    %116 = vsyncpa [#allocation3], 1

</llo_original>
